<compile_context>
chip_gen: v6e
topology: v6e:2x2x1
jax: 0.10.0
libtpu: 0.0.40
codegen_flags: <defaults>
</compile_context>

<pallas_src>
import jax
import jax.numpy as jnp
from jax.experimental import pallas as pl
from jax.experimental.pallas import tpu as pltpu


def mlp_kernel(x_ref, w1_ref, b1_ref, w2_ref, b2_ref, o_ref):
    # fc1: x @ W1 + b1, ReLU.  x arrives as f32; cast to bf16 right before the
    # MXU dot (f32 accumulation via preferred_element_type).
    x = x_ref[...].astype(jnp.bfloat16)
    h = jnp.dot(x, w1_ref[...], preferred_element_type=jnp.float32)
    h = jnp.maximum(h + b1_ref[...], 0.0)
    # fc2: h @ W2 + b2
    y = jnp.dot(h.astype(jnp.bfloat16), w2_ref[...],
                preferred_element_type=jnp.float32)
    o_ref[...] = (y + b2_ref[...]).astype(o_ref.dtype)


def _round_up(n, m):
    return ((n + m - 1) // m) * m


def prepare_params(w1, b1, w2, b2):
    """One-time (model-init) weight prep: pad hidden dim to 128, cast to bf16.

    w1: (F, H), b1: (H,), w2: (H, O), b2: (O,).
    Returns (w1_p (F, H_pad) bf16, b1_p (1, H_pad) f32,
             w2_p (H_pad, O) bf16, b2_p (1, O) f32).
    Zero padding of H contributes nothing: relu(0 + 0) = 0 rows of h hit zero
    rows of w2_p.
    """
    F, H = w1.shape
    O = w2.shape[1]
    H_pad = _round_up(H, 128)
    w1_p = jnp.pad(w1, ((0, 0), (0, H_pad - H))).astype(jnp.bfloat16)
    b1_p = jnp.pad(b1, (0, H_pad - H)).reshape(1, H_pad).astype(jnp.float32)
    w2_p = jnp.pad(w2, ((0, H_pad - H), (0, 0))).astype(jnp.bfloat16)
    b2_p = b2.reshape(1, O).astype(jnp.float32)
    return w1_p, b1_p, w2_p, b2_p


def _choose_batch_tile(b_pad, tb_target):
    """Pick the batch tile: large (amortize per-step overhead) but such that the
    grid has >= 2 steps when possible (v7x has 2 TensorCores)."""
    if b_pad <= 8:
        return b_pad
    tb = min(tb_target, _round_up(b_pad // 2, 8))
    return max(tb, 8)


def mlp_forward(x, w1_p, b1_p, w2_p, b2_p, tb_target=1024):
    """x: (B, F) f32; prepared params from `prepare_params`. Returns (B, O) f32."""
    B, F = x.shape
    assert w1_p.shape[0] == F
    H_pad = w1_p.shape[1]
    O = w2_p.shape[1]

    # Batch tiling: rows padded to a multiple of TB (8-aligned sublanes).
    B_pad = _round_up(B, 8)
    TB = _choose_batch_tile(B_pad, tb_target)
    grid_steps = pl.cdiv(B_pad, TB)
    B_pad = grid_steps * TB

    x_p = x if B_pad == B else jnp.pad(x, ((0, B_pad - B), (0, 0)))

    # Advisory cost: padded dims, 2 B/elem for bf16 weights, 4 B for f32 x/out.
    cost = pl.CostEstimate(
        flops=2 * B_pad * (F * H_pad + H_pad * O),
        transcendentals=0,
        bytes_accessed=(4 * B_pad * F          # x read (f32)
                        + 2 * F * H_pad        # w1 (bf16)
                        + 4 * H_pad            # b1 (f32)
                        + 2 * H_pad * O        # w2 (bf16)
                        + 4 * O                # b2 (f32)
                        + 4 * B_pad * O),      # out write (f32)
    )

    out = pl.pallas_call(
        mlp_kernel,
        out_shape=jax.ShapeDtypeStruct((B_pad, O), jnp.float32),
        grid=(grid_steps,),
        in_specs=[
            pl.BlockSpec((TB, F), lambda i: (i, 0)),       # x tile, F = full dim (72)
            pl.BlockSpec((F, H_pad), lambda i: (0, 0)),    # w1 (resident)
            pl.BlockSpec((1, H_pad), lambda i: (0, 0)),    # b1
            pl.BlockSpec((H_pad, O), lambda i: (0, 0)),    # w2, O = full dim (8)
            pl.BlockSpec((1, O), lambda i: (0, 0)),        # b2
        ],
        out_specs=pl.BlockSpec((TB, O), lambda i: (i, 0)), # unpadded output lanes
        compiler_params=pltpu.CompilerParams(
            dimension_semantics=("parallel",),
        ),
        cost_estimate=cost,
    )(x_p, w1_p, b1_p, w2_p, b2_p)

    # Padded batch rows contain relu(b1)@w2+b2 garbage; slice them off.
    return out[:B] if B_pad != B else out


if __name__ == "__main__":
    # Model(A_size=8): input_features = 8**2 + 8 = 72, hidden = 100, out = 8
    A_size = 8
    in_features = A_size ** 2 + A_size   # 72
    hidden = 100
    batch = 2

    key = jax.random.PRNGKey(0)
    k_x, k_w1, k_b1, k_w2, k_b2, k_x2 = jax.random.split(key, 6)

    # Deterministic init mimicking nn.Linear's U(-1/sqrt(fan_in), 1/sqrt(fan_in)).
    bound1 = 1.0 / jnp.sqrt(in_features)
    bound2 = 1.0 / jnp.sqrt(hidden)
    # Stored as [in, out] (transposed relative to PyTorch's [out, in]).
    w1 = jax.random.uniform(k_w1, (in_features, hidden), jnp.float32, -bound1, bound1)
    b1 = jax.random.uniform(k_b1, (hidden,), jnp.float32, -bound1, bound1)
    w2 = jax.random.uniform(k_w2, (hidden, A_size), jnp.float32, -bound2, bound2)
    b2 = jax.random.uniform(k_b2, (A_size,), jnp.float32, -bound2, bound2)

    # One-time weight prep (model init), NOT part of the per-call path.
    params = prepare_params(w1, b1, w2, b2)

    def ref_fn(xin):
        return jnp.maximum(xin @ w1 + b1, 0.0) @ w2 + b2

    # Small-shape run (the spec's tiny case): batch=2.
    x = jax.random.normal(k_x, (batch, in_features), jnp.float32)
    out = jax.block_until_ready(mlp_forward(x, *params))
    assert out.shape == (batch, A_size)
    # bf16 matmul inputs with f32 accumulation -> loose tolerance vs f32 ref.
    assert jnp.allclose(out, ref_fn(x), atol=2e-2, rtol=2e-2)

    # Larger batch exercises the multi-step ("parallel") grid axis (2 steps).
    big_batch = 256
    x_big = jax.random.normal(k_x2, (big_batch, in_features), jnp.float32)
    out_big = jax.block_until_ready(mlp_forward(x_big, *params))
    assert out_big.shape == (big_batch, A_size)
    assert jnp.allclose(out_big, ref_fn(x_big), atol=2e-2, rtol=2e-2)

    print("KERNEL_OK")
</pallas_src>

<mosaic_0001>
module attributes {stable_mosaic.version = 11 : i64} {
  func.func @mlp_kernel(%arg0: i32, %arg1: memref<8x72xf32, #tpu.memory_space<vmem>>, %arg2: memref<72x128xbf16, #tpu.memory_space<vmem>>, %arg3: memref<1x128xf32, #tpu.memory_space<vmem>>, %arg4: memref<128x8xbf16, #tpu.memory_space<vmem>>, %arg5: memref<1x8xf32, #tpu.memory_space<vmem>>, %arg6: memref<8x8xf32, #tpu.memory_space<vmem>>) attributes {dimension_semantics = [#tpu.dimension_semantics<parallel>], iteration_bounds = array<i64: 1>, scalar_prefetch = 0 : i64, scratch_operands = 0 : i64, tpu.core_type = #tpu.core_type<tc>, window_params = [{transform_indices = @transform_0, window_bounds = array<i64: 8, 72>}, {pipeline_mode = #tpu.pipeline_mode<synchronous>, transform_indices = @transform_1, window_bounds = array<i64: 72, 128>}, {pipeline_mode = #tpu.pipeline_mode<synchronous>, transform_indices = @transform_2, window_bounds = array<i64: 1, 128>}, {pipeline_mode = #tpu.pipeline_mode<synchronous>, transform_indices = @transform_3, window_bounds = array<i64: 128, 8>}, {pipeline_mode = #tpu.pipeline_mode<synchronous>, transform_indices = @transform_4, window_bounds = array<i64: 1, 8>}, {transform_indices = @transform_5, window_bounds = array<i64: 8, 8>}]} {
    %c0 = arith.constant 0 : index
    %c0_0 = arith.constant 0 : index
    %0 = vector.load %arg1[%c0, %c0_0] : memref<8x72xf32, #tpu.memory_space<vmem>>, vector<8x72xf32>
    %1 = arith.truncf %0 : vector<8x72xf32> to vector<8x72xbf16>
    %c0_1 = arith.constant 0 : index
    %c0_2 = arith.constant 0 : index
    %2 = vector.load %arg2[%c0_1, %c0_2] : memref<72x128xbf16, #tpu.memory_space<vmem>>, vector<72x128xbf16>
    %cst = arith.constant dense<0.000000e+00> : vector<8x128xf32>
    %3 = tpu.matmul %1, %2, %cst {dimension_numbers = #tpu.dot_dimension_numbers<[1], [0], [0], [1], [0, 0, 1, 1], [], []>} : vector<8x72xbf16>, vector<72x128xbf16>, vector<8x128xf32> -> vector<8x128xf32>
    %c0_3 = arith.constant 0 : index
    %c0_4 = arith.constant 0 : index
    %4 = vector.load %arg3[%c0_3, %c0_4] : memref<1x128xf32, #tpu.memory_space<vmem>>, vector<1x128xf32>
    %5 = vector.broadcast %4 : vector<1x128xf32> to vector<8x128xf32>
    %6 = arith.addf %3, %5 : vector<8x128xf32>
    %cst_5 = arith.constant 0.000000e+00 : f32
    %7 = vector.broadcast %cst_5 : f32 to vector<8x128xf32>
    %8 = arith.maximumf %6, %7 : vector<8x128xf32>
    %9 = arith.truncf %8 : vector<8x128xf32> to vector<8x128xbf16>
    %c0_6 = arith.constant 0 : index
    %c0_7 = arith.constant 0 : index
    %10 = vector.load %arg4[%c0_6, %c0_7] : memref<128x8xbf16, #tpu.memory_space<vmem>>, vector<128x8xbf16>
    %cst_8 = arith.constant dense<0.000000e+00> : vector<8x8xf32>
    %11 = tpu.matmul %9, %10, %cst_8 {dimension_numbers = #tpu.dot_dimension_numbers<[1], [0], [0], [1], [0, 0, 1, 1], [], []>} : vector<8x128xbf16>, vector<128x8xbf16>, vector<8x8xf32> -> vector<8x8xf32>
    %c0_9 = arith.constant 0 : index
    %c0_10 = arith.constant 0 : index
    %12 = vector.load %arg5[%c0_9, %c0_10] : memref<1x8xf32, #tpu.memory_space<vmem>>, vector<1x8xf32>
    %13 = vector.broadcast %12 : vector<1x8xf32> to vector<8x8xf32>
    %14 = arith.addf %11, %13 : vector<8x8xf32>
    %c0_11 = arith.constant 0 : index
    %c0_12 = arith.constant 0 : index
    %15 = vector.load %arg6[%c0_11, %c0_12] : memref<8x8xf32, #tpu.memory_space<vmem>>, vector<8x8xf32>
    tpu.vector_store %arg6[%c0_11, %c0_12], %14 {strides = array<i32>} : memref<8x8xf32, #tpu.memory_space<vmem>>, vector<8x8xf32>,
    return
  }
  func.func @transform_0(%arg0: i32) -> (i32, i32) {
    %c0_i32 = arith.constant 0 : i32
    %c0_i32_0 = arith.constant 0 : i32
    return %arg0, %c0_i32 : i32, i32
  }
  func.func @transform_1(%arg0: i32) -> (i32, i32) {
    %c0_i32 = arith.constant 0 : i32
    %c0_i32_0 = arith.constant 0 : i32
    %c0_i32_1 = arith.constant 0 : i32
    return %c0_i32, %c0_i32_0 : i32, i32
  }
  func.func @transform_2(%arg0: i32) -> (i32, i32) {
    %c0_i32 = arith.constant 0 : i32
    %c0_i32_0 = arith.constant 0 : i32
    %c0_i32_1 = arith.constant 0 : i32
    return %c0_i32, %c0_i32_0 : i32, i32
  }
  func.func @transform_3(%arg0: i32) -> (i32, i32) {
    %c0_i32 = arith.constant 0 : i32
    %c0_i32_0 = arith.constant 0 : i32
    %c0_i32_1 = arith.constant 0 : i32
    return %c0_i32, %c0_i32_0 : i32, i32
  }
  func.func @transform_4(%arg0: i32) -> (i32, i32) {
    %c0_i32 = arith.constant 0 : i32
    %c0_i32_0 = arith.constant 0 : i32
    %c0_i32_1 = arith.constant 0 : i32
    return %c0_i32, %c0_i32_0 : i32, i32
  }
  func.func @transform_5(%arg0: i32) -> (i32, i32) {
    %c0_i32 = arith.constant 0 : i32
    %c0_i32_0 = arith.constant 0 : i32
    return %arg0, %c0_i32 : i32, i32
  }
}

</mosaic_0001>

<llo_original>
// kernel: tpu_custom_call.1
$region0: #{tpu_custom_call.1}
  #allocation0 [shape = 'u32[]', space=smem, size = 0x4, offset = 0x4, fixed_abs, tag = 'smem constant byte address 0x4 - core index']
  #allocation1 [shape = 'u32[144,128]{1,0:T(1,128)}', space=vmem, size = 0x12000, scoped, tag = 'internal scratch']
  %s0 = inlined_call_operand.vmem [shape: f32[8,72], index: 0, kind: input, shape index: {}]
  %s1 = inlined_call_operand.vmem [shape: bf16[72,128], index: 1, kind: input, shape index: {}]
  %s2 = inlined_call_operand.vmem [shape: f32[1,128], index: 2, kind: input, shape index: {}]
  %s3 = inlined_call_operand.vmem [shape: bf16[128,8], index: 3, kind: input, shape index: {}]
  %s4 = inlined_call_operand.vmem [shape: f32[1,8], index: 4, kind: input, shape index: {}]
  %s5 = inlined_call_operand.hbm [shape: f32[8,8], index: 5, kind: output, shape index: {}]
  %s6 = sld [smem:[#allocation0]]
  $region30: #{tpu_custom_call.1} parent=0
    _
  %s8 = ssub.s32 1, %s6
  %s9 = scalar_select 0, %s8, %s6
  $region1: #{tpu_custom_call.1} parent=0
    #allocation2 [shape = 'u8[4096]{0}', space=vmem, size = 0x1000, scoped, tag = 'output window, operand 0, single buffered']
    #allocation3 [shape = 's32[1]{0}', space=sflag, size = 0x4, scoped, tag = 'scoped memory for tpu_custom_call.1']
    %10 = vsyncpa [#allocation3], 0
    // Predicated region
    $region2: #{tpu_custom_call.1} parent=1 // pred_check
      _
    $region3: #{tpu_custom_call.1} parent=1 // pred_check_branch
      %12 = sbr.rel (0) target = $region5
    $region4: #{tpu_custom_call.1} parent=1 // pred_region
      _
    $region5: #{tpu_custom_call.1} parent=1 // pred_fallthru
      _
    // Predicated region
    $region6: #{tpu_custom_call.1} parent=1 // pred_check
      _
    $region7: #{tpu_custom_call.1} parent=1 // pred_check_branch
      %14 = sbr.rel (0) target = $region9
    $region8: #{tpu_custom_call.1} parent=1 // pred_region
      _
    $region9: #{tpu_custom_call.1} parent=1 // pred_fallthru
      _
    // Predicated region
    $region10: #{tpu_custom_call.1} parent=1 // pred_check
      _
    $region11: #{tpu_custom_call.1} parent=1 // pred_check_branch
      %16 = sbr.rel (0) target = $region13
    $region12: #{tpu_custom_call.1} parent=1 // pred_region
      _
    $region13: #{tpu_custom_call.1} parent=1 // pred_fallthru
      _
    // Predicated region
    $region14: #{tpu_custom_call.1} parent=1 // pred_check
      _
    $region15: #{tpu_custom_call.1} parent=1 // pred_check_branch
      %18 = sbr.rel (0) target = $region17
    $region16: #{tpu_custom_call.1} parent=1 // pred_region
      _
    $region17: #{tpu_custom_call.1} parent=1 // pred_fallthru
      _
    // Predicated region
    $region18: #{tpu_custom_call.1} parent=1 // pred_check
      _
    $region19: #{tpu_custom_call.1} parent=1 // pred_check_branch
      %20 = sbr.rel (0) target = $region21
    $region20: #{tpu_custom_call.1} parent=1 // pred_region
      _
    $region21: #{tpu_custom_call.1} parent=1 // pred_fallthru
      _
    %v22 = vld [vmem:[%s0] sm:$0xff]
    %v23 = vpack.c.bf16 %v22, %v22
    %v24 = vld [vmem:[%s1] sm:$0xf]
    %v25 = vld [vmem:[%s1 + $0x4] sm:$0xf]
    %v26 = vld [vmem:[%s1 + $0x8] sm:$0xf]
    %v27 = vld [vmem:[%s1 + $0xc] sm:$0xf]
    %v28 = vld [vmem:[%s1 + $0x10] sm:$0xf]
    %v29 = vld [vmem:[%s1 + $0x14] sm:$0xf]
    %v30 = vld [vmem:[%s1 + $0x18] sm:$0xf]
    %v31 = vld [vmem:[%s1 + $0x1c] sm:$0xf]
    %v32 = vld [vmem:[%s1 + $0x20] sm:$0xf]
    %v33 = vld [vmem:[%s2] sm:$0x1]
    %v35 = vlaneseq
    %v36 = vshrl.u32 %v35, 7
    %v37 = vsub.s32 0, %v36
    %v38 = vrot.slane %v33, %v37
    %v49 = vunpack.c.l.b16 %v24
    %v50 = vunpack.c.l.b16 %v25
    %v51 = vunpack.c.l.b16 %v26
    %v52 = vunpack.c.l.b16 %v27
    %v53 = vunpack.c.l.b16 %v28
    %v54 = vunpack.c.l.b16 %v29
    %v55 = vunpack.c.l.b16 %v30
    %v56 = vunpack.c.l.b16 %v31
    %v57 = vunpack.c.l.b16 %v32
    %v58 = vpack.c.b16 %v50, %v49
    %v59 = vpack.c.b16 %v52, %v51
    %v60 = vpack.c.b16 %v54, %v53
    %v61 = vpack.c.b16 %v56, %v55
    %v62 = vpack.c.b16 %v57, %v57
    %vm67 = vcmask 588800
    %v69 = vsel %vm67, %v23, 0
    %vm71 = vcmask 1043456
    %v73 = vsel %vm71, %v62, 0
    %75 = vmatprep.subr.bf16.mxu0 0
    %76 = vmatpush1.bf16.msra.mxu0 0
    %77 = vmatprep.subr.bf16.mxu0 0
    %78 = vmatpush1.bf16.msra.mxu0 0
    %79 = vmatprep.subr.bf16.mxu0 0
    %80 = vmatpush1.bf16.msra.mxu0 0
    %81 = vmatprep.subr.bf16.mxu0 0
    %82 = vmatpush1.bf16.msra.mxu0 %v73
    %83 = vmatprep.subr.bf16.mxu0 0
    %84 = vmatpush1.bf16.msra.mxu0 %v61
    %85 = vmatprep.subr.bf16.mxu0 0
    %86 = vmatpush1.bf16.msra.mxu0 %v60
    %87 = vmatprep.subr.bf16.mxu0 0
    %88 = vmatpush1.bf16.msra.mxu0 %v59
    %89 = vmatprep.subr.bf16.mxu0 0
    %90 = vmatpush1.bf16.msra.mxu0 %v58
    %91 = vmatprep.subr.bf16.mxu0 0
    %92 = vmatpush2.bf16.msra.mxu0 0
    %93 = vmatprep.subr.bf16.mxu0 0
    %94 = vmatpush2.bf16.msra.mxu0 0
    %95 = vmatprep.subr.bf16.mxu0 0
    %96 = vmatpush2.bf16.msra.mxu0 0
    %97 = vmatprep.subr.bf16.mxu0 0
    %98 = vmatpush2.bf16.msra.mxu0 0
    %99 = vmatprep.subr.bf16.mxu0 0
    %100 = vmatpush2.bf16.msra.mxu0 0
    %101 = vmatprep.subr.bf16.mxu0 0
    %102 = vmatpush2.bf16.msra.mxu0 0
    %103 = vmatprep.subr.bf16.mxu0 0
    %104 = vmatpush2.bf16.msra.mxu0 0
    %105 = vmatprep.subr.bf16.mxu0 0
    %106 = vmatpush2.bf16.msra.mxu0 0
    %107 = vmatprep.mubr.bf16.mxu0 0
    %108 = vmatmul.mubr.bf16.gmra.mxu0 %v69
    %v109 = vpop.f32.mrf.mxu0
    %v110 = vadd.f32 %v38, %v109
    %v111 = vpop.f32.mrf.mxu0
    %v112 = vpop.f32.mrf.mxu0
    %v113 = vpop.f32.mrf.mxu0
    %114 = vdwg.mxu0
    %v115 = vmax.f32 %v110, 0.0
    %v116 = vpack.c.bf16 %v115, %v115
    %v117 = vld [vmem:[%s3] sm:$0xf]
    %v118 = vld [vmem:[%s3 + $0x4] sm:$0xf]
    %v119 = vld [vmem:[%s3 + $0x8] sm:$0xf]
    %v120 = vld [vmem:[%s3 + $0xc] sm:$0xf]
    %v121 = vld [vmem:[%s3 + $0x10] sm:$0xf]
    %v122 = vld [vmem:[%s3 + $0x14] sm:$0xf]
    %v123 = vld [vmem:[%s3 + $0x18] sm:$0xf]
    %v124 = vld [vmem:[%s3 + $0x1c] sm:$0xf]
    %v125 = vld [vmem:[%s3 + $0x20] sm:$0xf]
    %v126 = vld [vmem:[%s3 + $0x24] sm:$0xf]
    %v127 = vld [vmem:[%s3 + $0x28] sm:$0xf]
    %v128 = vld [vmem:[%s3 + $0x2c] sm:$0xf]
    %v129 = vld [vmem:[%s3 + $0x30] sm:$0xf]
    %v130 = vld [vmem:[%s3 + $0x34] sm:$0xf]
    %v131 = vld [vmem:[%s3 + $0x38] sm:$0xf]
    %v132 = vld [vmem:[%s3 + $0x3c] sm:$0xf]
    %v133 = vld [vmem:[%s4] sm:$0x1]
    %v135 = vlaneseq
    %v136 = vshrl.u32 %v135, 7
    %v137 = vsub.s32 0, %v136
    %v138 = vrot.slane %v133, %v137
    %v156 = vunpack.c.l.b16 %v117
    %v157 = vunpack.c.l.b16 %v118
    %v158 = vunpack.c.l.b16 %v119
    %v159 = vunpack.c.l.b16 %v120
    %v160 = vunpack.c.l.b16 %v121
    %v161 = vunpack.c.l.b16 %v122
    %v162 = vunpack.c.l.b16 %v123
    %v163 = vunpack.c.l.b16 %v124
    %v164 = vunpack.c.l.b16 %v125
    %v165 = vunpack.c.l.b16 %v126
    %v166 = vunpack.c.l.b16 %v127
    %v167 = vunpack.c.l.b16 %v128
    %v168 = vunpack.c.l.b16 %v129
    %v169 = vunpack.c.l.b16 %v130
    %v170 = vunpack.c.l.b16 %v131
    %v171 = vunpack.c.l.b16 %v132
    %v172 = vpack.c.b16 %v157, %v156
    %v173 = vpack.c.b16 %v159, %v158
    %v174 = vpack.c.b16 %v161, %v160
    %v175 = vpack.c.b16 %v163, %v162
    %v176 = vpack.c.b16 %v165, %v164
    %v177 = vpack.c.b16 %v167, %v166
    %v178 = vpack.c.b16 %v169, %v168
    %v179 = vpack.c.b16 %v171, %v170
    %188 = vmatprep.subr.bf16.mxu0 0
    %189 = vmatpush1.bf16.msra.mxu0 %v179
    %190 = vmatprep.subr.bf16.mxu0 0
    %191 = vmatpush1.bf16.msra.mxu0 %v178
    %192 = vmatprep.subr.bf16.mxu0 0
    %193 = vmatpush1.bf16.msra.mxu0 %v177
    %194 = vmatprep.subr.bf16.mxu0 0
    %195 = vmatpush1.bf16.msra.mxu0 %v176
    %196 = vmatprep.subr.bf16.mxu0 0
    %197 = vmatpush1.bf16.msra.mxu0 %v175
    %198 = vmatprep.subr.bf16.mxu0 0
    %199 = vmatpush1.bf16.msra.mxu0 %v174
    %200 = vmatprep.subr.bf16.mxu0 0
    %201 = vmatpush1.bf16.msra.mxu0 %v173
    %202 = vmatprep.subr.bf16.mxu0 0
    %203 = vmatpush1.bf16.msra.mxu0 %v172
    %204 = vmatprep.subr.bf16.mxu0 0
    %205 = vmatpush2.bf16.msra.mxu0 0
    %206 = vmatprep.subr.bf16.mxu0 0
    %207 = vmatpush2.bf16.msra.mxu0 0
    %208 = vmatprep.subr.bf16.mxu0 0
    %209 = vmatpush2.bf16.msra.mxu0 0
    %210 = vmatprep.subr.bf16.mxu0 0
    %211 = vmatpush2.bf16.msra.mxu0 0
    %212 = vmatprep.subr.bf16.mxu0 0
    %213 = vmatpush2.bf16.msra.mxu0 0
    %214 = vmatprep.subr.bf16.mxu0 0
    %215 = vmatpush2.bf16.msra.mxu0 0
    %216 = vmatprep.subr.bf16.mxu0 0
    %217 = vmatpush2.bf16.msra.mxu0 0
    %218 = vmatprep.subr.bf16.mxu0 0
    %219 = vmatpush2.bf16.msra.mxu0 0
    %220 = vmatprep.mubr.bf16.mxu0 0
    %221 = vmatmul.mubr.bf16.gmra.mxu0 %v116
    %v222 = vpop.f32.mrf.mxu0
    %v223 = vadd.f32 %v138, %v222
    %v224 = vpop.f32.mrf.mxu0
    %v225 = vpop.f32.mrf.mxu0
    %v226 = vpop.f32.mrf.mxu0
    %227 = vdwg.mxu0
    %vm228 = vcmask 64512
    %229 = vst.msk [vmem:[#allocation2] sm:$0xff] %vm228, %v223
    // Predicated region
    $region22: #{tpu_custom_call.1} parent=1 // pred_check
      _
    $region23: #{tpu_custom_call.1} parent=1 // pred_check_branch
      %231 = sbr.rel (0) target = $region25
    $region24: #{tpu_custom_call.1} parent=1 // pred_region
      %s233 = ssub.s32 128, 128
      %234 = vsyncadd [#allocation3], %s233
      %s236 = sshll.u32 [#allocation2], 4
      %s237 = int_to_ptr.vmem [resolvable:$true] %s236
      %239 = dma.vmem_to_hbm [thread:$0]  %s237, 128, %s5, [#allocation3]
    $region25: #{tpu_custom_call.1} parent=1 // pred_fallthru
      _
    // Predicated region
    $region26: #{tpu_custom_call.1} parent=1 // pred_check
      _
    $region27: #{tpu_custom_call.1} parent=1 // pred_check_branch
      %241 = sbr.rel (0) target = $region29
    $region28: #{tpu_custom_call.1} parent=1 // pred_region
      %242 = dma.done [#allocation3], 128
    $region29: #{tpu_custom_call.1} parent=1 // pred_fallthru
      _
    %243 = vsyncpa [#allocation3], 1

</llo_original>
